<compile_context>
chip_gen: v5e
topology: v5e:2x2
jax: 0.10.0
libtpu: 0.0.40
codegen_flags: <defaults>
</compile_context>

<pallas_src>
import functools

import jax
import jax.numpy as jnp
from jax.experimental import pallas as pl
from jax.experimental.pallas import tpu as pltpu

KERNELS = {
    "linear": [1 / 8, 3 / 8, 3 / 8, 1 / 8],
    "cubic": [-0.01171875, -0.03515625, 0.11328125, 0.43359375,
              0.43359375, 0.11328125, -0.03515625, -0.01171875],
    "lanczos3": [0.003689131001010537, 0.015056144446134567, -0.03399861603975296,
                 -0.066637322306633, 0.13550527393817902, 0.44638532400131226,
                 0.44638532400131226, 0.13550527393817902, -0.066637322306633,
                 -0.03399861603975296, 0.015056144446134567, 0.003689131001010537],
}

STRIDE = 4   # nn.functional.conv1d(..., stride=4)
HALO = 16    # >= K - STRIDE for every built-in kernel; multiple of 16 so the
             # halo block stays sublane-aligned for f32 and bf16.


def _round_up(x: int, m: int) -> int:
    return (x + m - 1) // m * m


def _downsample_kernel(x_ref, halo_ref, o_ref, buf_ref, *, taps, TO):
    """One output tile.

    x_ref:    (STRIDE*TO, N)   stride-aligned input slab for this tile
    halo_ref: (HALO, N)        rows immediately after the slab (tap overreach)
    o_ref:    (TO, N)          output tile
    buf_ref:  (STRIDE*TO+HALO, N) VMEM staging buffer so every tap reads a
                               full, aligned stride-4 sublane slab.
    """
    body = STRIDE * TO
    # Stage slab + halo contiguously (aligned, full-width VMEM copies).
    buf_ref[:body, :] = x_ref[...]
    buf_ref[body:, :] = halo_ref[...]

    acc = None
    for k, w in enumerate(taps):                      # static unroll, K <= 12
        # rows k, k+4, ..., k+4*(TO-1): one strided sublane slab per tap.
        slab = buf_ref[pl.ds(k, TO, STRIDE), :].astype(jnp.float32)
        term = slab * jnp.float32(w)
        acc = term if acc is None else acc + term
    o_ref[...] = acc.astype(o_ref.dtype)              # full-tile unmasked store


def make_downsample1d(kernel: str = "linear", pad_mode: str = "reflect",
                      max_out_tile: int = 512):
    taps = tuple(float(t) for t in KERNELS[kernel])
    K = len(taps)
    pad = K // 2 - 1
    assert K % STRIDE == 0 and (K - STRIDE) <= HALO
    max_out_tile = max(16, (max_out_tile // 16) * 16)

    @jax.jit
    def forward(x: jax.Array) -> jax.Array:
        """x: (B, C, L) (PyTorch NCL). Returns (B, C, L_out)."""
        B, C, L = x.shape
        N = B * C
        itemsize = jnp.dtype(x.dtype).itemsize

        Lp = L + 2 * pad
        O = (Lp - K) // STRIDE + 1

        # ---- tile sizing: ~1 MiB per (double-buffered) input block; TO is a
        # multiple of 16 so all blocks are sublane-aligned for f32/bf16.
        to_budget = ((1 << 20) // max(1, STRIDE * N * itemsize)) // 16 * 16
        TO = max(16, min(max_out_tile, to_budget, _round_up(O, 16)))
        G = pl.cdiv(O, TO)
        O_pad = G * TO
        L_need = STRIDE * O_pad + HALO

        # ---- reflect pad + relayout to (length, B*C); under jit these fuse
        # into a single relayout pass over the input.
        # TODO(synk): have the surrounding model supply channels-last
        # activations and mirror the `pad` boundary rows inside the kernel to
        # remove this extra HBM pass entirely.
        xpad = jnp.pad(x, ((0, 0), (0, 0), (pad, pad)), mode=pad_mode)
        x2 = jnp.transpose(xpad, (2, 0, 1)).reshape(Lp, N)
        x2 = jnp.pad(x2, ((0, L_need - Lp), (0, 0)))      # zero tail (never
        # read by valid outputs; padded-out output rows are sliced off below)

        kernel_fn = functools.partial(_downsample_kernel, taps=taps, TO=TO)

        out2 = pl.pallas_call(
            kernel_fn,
            out_shape=jax.ShapeDtypeStruct((O_pad, N), x.dtype),
            grid=(G,),
            in_specs=[
                # stride-aligned main slab for output tile j
                pl.BlockSpec((STRIDE * TO, N), lambda j: (j, 0)),
                # 16-row halo right after the slab (block units of HALO rows)
                pl.BlockSpec((HALO, N),
                             lambda j: ((j + 1) * (STRIDE * TO // HALO), 0)),
            ],
            out_specs=pl.BlockSpec((TO, N), lambda j: (j, 0)),
            scratch_shapes=[pltpu.VMEM((STRIDE * TO + HALO, N), x.dtype)],
            compiler_params=pltpu.CompilerParams(
                dimension_semantics=("parallel",),
                vmem_limit_bytes=32 * 1024 * 1024,
            ),
        )(x2, x2)

        y = out2[:O].reshape(O, B, C)
        return jnp.transpose(y, (1, 2, 0))

    return forward


def _reference(x, kernel="linear", pad_mode="reflect"):
    """Pure-JAX reference of the PyTorch forward (depthwise strided conv)."""
    taps = KERNELS[kernel]
    K = len(taps)
    pad = K // 2 - 1
    xpad = jnp.pad(x, ((0, 0), (0, 0), (pad, pad)), mode=pad_mode)
    Lp = xpad.shape[-1]
    O = (Lp - K) // STRIDE + 1
    cols = []
    for o in range(O):
        acc = sum(taps[k] * xpad[:, :, STRIDE * o + k].astype(jnp.float32)
                  for k in range(K))
        cols.append(acc.astype(x.dtype))
    return jnp.stack(cols, axis=-1)


if __name__ == "__main__":
    key = jax.random.PRNGKey(0)
    ok = True

    # 1) Small canonical shape (B=2, C=4, L=16), default "linear" kernel.
    x1 = jax.random.normal(key, (2, 4, 16), dtype=jnp.float32)
    y1 = jax.block_until_ready(make_downsample1d("linear")(x1))
    r1 = _reference(x1, "linear")
    ok &= y1.shape == r1.shape and bool(jnp.allclose(y1, r1, atol=1e-5, rtol=1e-5))

    # 2) Multi-tile grid + halo path (K=12 taps reach across tile boundaries).
    x2 = jax.random.normal(jax.random.fold_in(key, 1), (2, 3, 150), dtype=jnp.float32)
    y2 = jax.block_until_ready(make_downsample1d("lanczos3", max_out_tile=16)(x2))
    r2 = _reference(x2, "lanczos3")
    ok &= y2.shape == r2.shape and bool(jnp.allclose(y2, r2, atol=1e-5, rtol=1e-5))

    # 3) Cubic taps, odd channel count.
    x3 = jax.random.normal(jax.random.fold_in(key, 2), (1, 5, 41), dtype=jnp.float32)
    y3 = jax.block_until_ready(make_downsample1d("cubic")(x3))
    r3 = _reference(x3, "cubic")
    ok &= y3.shape == r3.shape and bool(jnp.allclose(y3, r3, atol=1e-5, rtol=1e-5))

    assert ok, "mismatch vs reference"
    print("KERNEL_OK")
</pallas_src>

<mosaic_0001>
module attributes {stable_mosaic.version = 11 : i64} {
  func.func @_downsample_kernel(%arg0: i32, %arg1: memref<64x8xf32, #tpu.memory_space<vmem>>, %arg2: memref<16x8xf32, #tpu.memory_space<vmem>>, %arg3: memref<16x8xf32, #tpu.memory_space<vmem>>, %arg4: memref<80x8xf32, #tpu.memory_space<vmem>>) attributes {dimension_semantics = [#tpu.dimension_semantics<parallel>], iteration_bounds = array<i64: 1>, scalar_prefetch = 0 : i64, scratch_operands = 1 : i64, tpu.core_type = #tpu.core_type<tc>, window_params = [{transform_indices = @transform_0, window_bounds = array<i64: 64, 8>}, {transform_indices = @transform_1, window_bounds = array<i64: 16, 8>}, {transform_indices = @transform_2, window_bounds = array<i64: 16, 8>}]} {
    %c0 = arith.constant 0 : index
    %c0_0 = arith.constant 0 : index
    %0 = vector.load %arg1[%c0, %c0_0] : memref<64x8xf32, #tpu.memory_space<vmem>>, vector<64x8xf32>
    %c0_1 = arith.constant 0 : index
    %c0_2 = arith.constant 0 : index
    %1 = vector.load %arg4[%c0_1, %c0_2] : memref<80x8xf32, #tpu.memory_space<vmem>>, vector<64x8xf32>
    tpu.vector_store %arg4[%c0_1, %c0_2], %0 {strides = array<i32>} : memref<80x8xf32, #tpu.memory_space<vmem>>, vector<64x8xf32>,
    %c0_3 = arith.constant 0 : index
    %c0_4 = arith.constant 0 : index
    %2 = vector.load %arg2[%c0_3, %c0_4] : memref<16x8xf32, #tpu.memory_space<vmem>>, vector<16x8xf32>
    %c64 = arith.constant 64 : index
    %c0_5 = arith.constant 0 : index
    %3 = vector.load %arg4[%c64, %c0_5] : memref<80x8xf32, #tpu.memory_space<vmem>>, vector<16x8xf32>
    tpu.vector_store %arg4[%c64, %c0_5], %2 {strides = array<i32>} : memref<80x8xf32, #tpu.memory_space<vmem>>, vector<16x8xf32>,
    %c0_6 = arith.constant 0 : index
    %c0_7 = arith.constant 0 : index
    %4 = tpu.strided_load %arg4[%c0_6, %c0_7] {strides = array<i32: 4, 1>} : memref<80x8xf32, #tpu.memory_space<vmem>>, vector<16x8xf32>
    %cst = arith.constant 1.250000e-01 : f32
    %5 = vector.broadcast %cst : f32 to vector<16x8xf32>
    %6 = arith.mulf %4, %5 : vector<16x8xf32>
    %c1 = arith.constant 1 : index
    %c0_8 = arith.constant 0 : index
    %7 = tpu.strided_load %arg4[%c1, %c0_8] {strides = array<i32: 4, 1>} : memref<80x8xf32, #tpu.memory_space<vmem>>, vector<16x8xf32>
    %cst_9 = arith.constant 3.750000e-01 : f32
    %8 = vector.broadcast %cst_9 : f32 to vector<16x8xf32>
    %9 = arith.mulf %7, %8 : vector<16x8xf32>
    %10 = arith.addf %6, %9 : vector<16x8xf32>
    %c2 = arith.constant 2 : index
    %c0_10 = arith.constant 0 : index
    %11 = tpu.strided_load %arg4[%c2, %c0_10] {strides = array<i32: 4, 1>} : memref<80x8xf32, #tpu.memory_space<vmem>>, vector<16x8xf32>
    %cst_11 = arith.constant 3.750000e-01 : f32
    %12 = vector.broadcast %cst_11 : f32 to vector<16x8xf32>
    %13 = arith.mulf %11, %12 : vector<16x8xf32>
    %14 = arith.addf %10, %13 : vector<16x8xf32>
    %c3 = arith.constant 3 : index
    %c0_12 = arith.constant 0 : index
    %15 = tpu.strided_load %arg4[%c3, %c0_12] {strides = array<i32: 4, 1>} : memref<80x8xf32, #tpu.memory_space<vmem>>, vector<16x8xf32>
    %cst_13 = arith.constant 1.250000e-01 : f32
    %16 = vector.broadcast %cst_13 : f32 to vector<16x8xf32>
    %17 = arith.mulf %15, %16 : vector<16x8xf32>
    %18 = arith.addf %14, %17 : vector<16x8xf32>
    %c0_14 = arith.constant 0 : index
    %c0_15 = arith.constant 0 : index
    %19 = vector.load %arg3[%c0_14, %c0_15] : memref<16x8xf32, #tpu.memory_space<vmem>>, vector<16x8xf32>
    tpu.vector_store %arg3[%c0_14, %c0_15], %18 {strides = array<i32>} : memref<16x8xf32, #tpu.memory_space<vmem>>, vector<16x8xf32>,
    return
  }
  func.func @transform_0(%arg0: i32) -> (i32, i32) {
    %c0_i32 = arith.constant 0 : i32
    %c0_i32_0 = arith.constant 0 : i32
    return %arg0, %c0_i32 : i32, i32
  }
  func.func @transform_1(%arg0: i32) -> (i32, i32) {
    %c1_i32 = arith.constant 1 : i32
    %0 = arith.addi %arg0, %c1_i32 : i32
    %c4_i32 = arith.constant 4 : i32
    %1 = arith.muli %0, %c4_i32 : i32
    %c0_i32 = arith.constant 0 : i32
    %c0_i32_0 = arith.constant 0 : i32
    return %1, %c0_i32 : i32, i32
  }
  func.func @transform_2(%arg0: i32) -> (i32, i32) {
    %c0_i32 = arith.constant 0 : i32
    %c0_i32_0 = arith.constant 0 : i32
    return %arg0, %c0_i32 : i32, i32
  }
}

</mosaic_0001>

<llo_original>
// kernel: forward.1
$region0: #{forward.1}
  #allocation0 [shape = 'u32[]', space=smem, size = 0x4, offset = 0x4, fixed_abs, tag = 'smem constant byte address 0x4 - core index']
  #allocation1 [shape = 'u32[72,128]{1,0:T(1,128)}', space=vmem, size = 0x9000, scoped, tag = 'internal scratch']
  #allocation2 [shape = 'f32[80,8]{1,0:T(8,128)}', space=vmem, size = 0xa000, scoped, tag = 'scratch operand']
  %s0 = inlined_call_operand.vmem [shape: f32[80,8], index: 0, kind: input, shape index: {}, may-alias: {0,1}]
  %s1 = inlined_call_operand.vmem [shape: f32[80,8], index: 1, kind: input, shape index: {}, may-alias: {0,1}]
  %s2 = inlined_call_operand.vmem [shape: f32[16,8], index: 2, kind: output, shape index: {}]
  %s3 = sld [smem:[#allocation0]]
  $region18: #{forward.1} parent=0
    _
  %s5 = ssub.s32 1, %s3
  %s6 = scalar_select 0, %s5, %s3
  // Predicated region
  $region2: #{forward.1} parent=0 // pred_check
    _
  $region3: #{forward.1} parent=0 // pred_check_branch
    %8 = sbr.rel (0) target = $region5
  $region4: #{forward.1} parent=0 // pred_region
    _
  $region5: #{forward.1} parent=0 // pred_fallthru
    _
  // Predicated region
  $region6: #{forward.1} parent=0 // pred_check
    _
  $region7: #{forward.1} parent=0 // pred_check_branch
    %10 = sbr.rel (0) target = $region9
  $region8: #{forward.1} parent=0 // pred_region
    %s11 = sadd.s32 0, 1
    %s12 = smul.u32 %s11, 4
    %s13 = smul.u32 2, %s12
    %p14 = scmp.lt.s32.totalorder %s13, 9
    %s15 = scalar_select %p14, %s13, 9
    %s16 = smul.addr %s15, 8
    %s17 = scalar_lea.vmem %s1, %s16
    %s18 = sadd.s32 0, 1
    %s19 = smul.u32 %s18, 4
    %s20 = smul.u32 2, %s19
  $region9: #{forward.1} parent=0 // pred_fallthru
    _
  %s21 = sadd.s32 0, 1
  %s22 = smul.u32 %s21, 4
  %s23 = smul.u32 2, %s22
  %p24 = scmp.lt.s32.totalorder %s23, 9
  %s25 = scalar_select %p24, %s23, 9
  %s26 = smul.addr %s25, 8
  %s27 = scalar_lea.vmem %s1, %s26
  %s28 = sadd.s32 0, 1
  %s29 = smul.u32 %s28, 4
  %s30 = smul.u32 2, %s29
  %p31 = scmp.lt.s32.totalorder %s30, 9
  %s32 = scalar_select %p31, %s30, 9
  %s33 = smul.addr %s32, 8
  %s34 = scalar_lea.vmem %s1, %s33
  %s35 = sadd.s32 0, 1
  %s36 = smul.u32 %s35, 4
  %s37 = smul.u32 2, %s36
  %v38 = vld [vmem:[%s0] sm:$0xff]
  %v39 = vld [vmem:[%s0 + $0x8] sm:$0xff]
  %v40 = vld [vmem:[%s0 + $0x10] sm:$0xff]
  %v41 = vld [vmem:[%s0 + $0x18] sm:$0xff]
  %v42 = vld [vmem:[%s0 + $0x20] sm:$0xff]
  %v43 = vld [vmem:[%s0 + $0x28] sm:$0xff]
  %v44 = vld [vmem:[%s0 + $0x30] sm:$0xff]
  %v45 = vld [vmem:[%s0 + $0x38] sm:$0xff]
  %vm46 = vcmask 64512
  %47 = vst.msk [vmem:[#allocation2] sm:$0xff] %vm46, %v38
  %48 = vst.msk [vmem:[#allocation2 + $0x8] sm:$0xff] %vm46, %v39
  %49 = vst.msk [vmem:[#allocation2 + $0x10] sm:$0xff] %vm46, %v40
  %50 = vst.msk [vmem:[#allocation2 + $0x18] sm:$0xff] %vm46, %v41
  %51 = vst.msk [vmem:[#allocation2 + $0x20] sm:$0xff] %vm46, %v42
  %52 = vst.msk [vmem:[#allocation2 + $0x28] sm:$0xff] %vm46, %v43
  %53 = vst.msk [vmem:[#allocation2 + $0x30] sm:$0xff] %vm46, %v44
  %54 = vst.msk [vmem:[#allocation2 + $0x38] sm:$0xff] %vm46, %v45
  %v55 = vld [vmem:[%s34] sm:$0xff]
  %v56 = vld [vmem:[%s34 + $0x8] sm:$0xff]
  %57 = vst.msk [vmem:[#allocation2 + $0x40] sm:$0xff] %vm46, %v55
  %58 = vst.msk [vmem:[#allocation2 + $0x48] sm:$0xff] %vm46, %v56
  %v59 = vld [vmem:[#allocation2] ss:$4 sm:$0xff]
  %s60 = scalar_lea.vmem [#allocation2], 32
  %v61 = vld [vmem:[%s60] ss:$4 sm:$0xff]
  %v62 = vmul.f32 %v59, 0.125
  %v63 = vmul.f32 %v61, 0.125
  %s64 = scalar_lea.vmem [#allocation2], 1
  %v65 = vld [vmem:[%s64] ss:$4 sm:$0xff]
  %s66 = scalar_lea.vmem [#allocation2], 33
  %v67 = vld [vmem:[%s66] ss:$4 sm:$0xff]
  %v68 = vmul.f32 %v65, 0.375
  %v69 = vmul.f32 %v67, 0.375
  %v70 = vadd.f32 %v62, %v68
  %v71 = vadd.f32 %v63, %v69
  %s72 = scalar_lea.vmem [#allocation2], 2
  %v73 = vld [vmem:[%s72] ss:$4 sm:$0xff]
  %s74 = scalar_lea.vmem [#allocation2], 34
  %v75 = vld [vmem:[%s74] ss:$4 sm:$0xff]
  %v76 = vmul.f32 %v73, 0.375
  %v77 = vmul.f32 %v75, 0.375
  %v78 = vadd.f32 %v70, %v76
  %v79 = vadd.f32 %v71, %v77
  %s80 = scalar_lea.vmem [#allocation2], 3
  %v81 = vld [vmem:[%s80] ss:$4 sm:$0xff]
  %s82 = scalar_lea.vmem [#allocation2], 35
  %v83 = vld [vmem:[%s82] ss:$4 sm:$0xff]
  %v84 = vmul.f32 %v81, 0.125
  %v85 = vmul.f32 %v83, 0.125
  %v86 = vadd.f32 %v78, %v84
  %v87 = vadd.f32 %v79, %v85
  %88 = vst.msk [vmem:[%s2] sm:$0xff] %vm46, %v86
  %89 = vst.msk [vmem:[%s2 + $0x8] sm:$0xff] %vm46, %v87
  // Predicated region
  $region10: #{forward.1} parent=0 // pred_check
    _
  $region11: #{forward.1} parent=0 // pred_check_branch
    %91 = sbr.rel (0) target = $region13
  $region12: #{forward.1} parent=0 // pred_region
    _
  $region13: #{forward.1} parent=0 // pred_fallthru
    _
  // Predicated region
  $region14: #{forward.1} parent=0 // pred_check
    _
  $region15: #{forward.1} parent=0 // pred_check_branch
    %93 = sbr.rel (0) target = $region17
  $region16: #{forward.1} parent=0 // pred_region
    _
  $region17: #{forward.1} parent=0 // pred_fallthru
    _

</llo_original>
